<compile_context>
chip_gen: v7x
topology: tpu7x:2x2x1
jax: 0.10.0
libtpu: 0.0.40
codegen_flags: <defaults>
</compile_context>

<pallas_src>
from functools import partial

import jax
import jax.numpy as jnp
from jax.experimental import pallas as pl
from jax.experimental.pallas import tpu as pltpu

LANES = 128


def _partial_sum(v):
    """(rows, 128) -> (8, 128) sublane/lane-parallel partial sums (VPU adds only)."""
    r = v.shape[0]
    if r % 8:
        v = jnp.pad(v, ((0, 8 - r % 8), (0, 0)))   # rare: only when chunk == R < 8k
        r = v.shape[0]
    return jnp.sum(v.reshape(r // 8, 8, LANES), axis=0)


def _gdl_stats_kernel(x_ref, t_ref, o_ref, acc_t, acc_it, acc_p, *,
                      apply_sigmoid, rem):
    # x_ref, t_ref: (1, 1, chunk, 128) native-dtype tiles of one (class, batch) stream
    # o_ref:        (1, 1, 3, 128) — the 3 reductions, lane-broadcast, written once
    # acc_*:        (8, 128) f32 VMEM partial-sum accumulators (VPU-only hot loop)
    k = pl.program_id(2)
    last = k == pl.num_programs(2) - 1

    @pl.when(k == 0)
    def _init():
        acc_t[...] = jnp.zeros_like(acc_t)
        acc_it[...] = jnp.zeros_like(acc_it)
        acc_p[...] = jnp.zeros_like(acc_p)

    x = x_ref[0, 0].astype(jnp.float32)          # in-kernel upcast (native-dtype stream)
    t = t_ref[0, 0].astype(jnp.float32)
    p = jax.nn.sigmoid(x) if apply_sigmoid else x    # fused normalization (EUP slot)

    def _accum(pv, tv):
        acc_t[...] += _partial_sum(tv)           # sum(target)
        acc_it[...] += _partial_sum(pv * tv)     # sum(input * target)
        acc_p[...] += _partial_sum(pv)           # sum(input)

    if rem is None:
        _accum(p, t)                             # fully-valid stream: no masking at all
    else:
        # Only the last chunk of each stream contains invalid elements
        # (Pallas boundary-block rows are undefined; 128-pad zeros would add
        # sigmoid(0)=0.5 to sum(input)).  Mask only there.
        @pl.when(k < pl.num_programs(2) - 1)
        def _full():
            _accum(p, t)

        @pl.when(last)
        def _masked():
            rows = p.shape[0]
            off = (jax.lax.broadcasted_iota(jnp.int32, (rows, LANES), 0) * LANES
                   + jax.lax.broadcasted_iota(jnp.int32, (rows, LANES), 1))
            valid = off < rem
            _accum(jnp.where(valid, p, 0.0), jnp.where(valid, t, 0.0))

    @pl.when(last)
    def _finalize():
        s_t = jnp.sum(acc_t[...])                # single XLU cross-lane reduce per stream
        s_it = jnp.sum(acc_it[...])
        s_p = jnp.sum(acc_p[...])
        vals = jnp.concatenate(
            [jnp.full((1, LANES), s_t, jnp.float32),
             jnp.full((1, LANES), s_it, jnp.float32),
             jnp.full((1, LANES), s_p, jnp.float32)],
            axis=0,
        )                                        # (3, 128) lane-dense
        o_ref[...] = vals[None, None]


def generalized_dice_loss(inputs, target, *, epsilon=1e-5, weight=None,
                          ignore_index=None, sigmoid_normalization=True,
                          chunk_rows=2048):
    """Matches GeneralizedDiceLoss.forward with default arguments.

    chunk_rows: rows of 128 lanes per grid step.  2048 is a good default for
    v5e/v6e; raise to 4096 on v7x to amortize per-step overhead.
    """
    assert ignore_index is None, "ignore_index not implemented"  # TODO(synk)
    assert inputs.shape == target.shape, "'input' and 'target' must have the same shape"

    N, C = inputs.shape[0], inputs.shape[1]
    S = 1
    for d in inputs.shape[2:]:
        S *= int(d)

    apply_sigmoid = bool(sigmoid_normalization)
    if not apply_sigmoid:
        # Softmax needs cross-channel info per voxel; kept as a pre-kernel XLA
        # pass (cheap relative to the reductions, but a full-volume pass).
        inputs = jax.nn.softmax(inputs.astype(jnp.float32), axis=1)

    if S % LANES == 0:
        # Free, layout-preserving reshape: no transpose / cast / pad copies.
        x = inputs.reshape(N, C, S // LANES, LANES)
        t = target.reshape(N, C, S // LANES, LANES)
    else:
        # Fallback: one zero-pad pass to make rows lane-dense; the padded
        # elements are masked out inside the kernel (no sigmoid sentinel).
        pad = LANES - S % LANES
        x = jnp.pad(inputs.reshape(N, C, S), ((0, 0), (0, 0), (0, pad)))
        t = jnp.pad(target.reshape(N, C, S), ((0, 0), (0, 0), (0, pad)))
        x = x.reshape(N, C, -1, LANES)
        t = t.reshape(N, C, -1, LANES)

    R = x.shape[2]
    if R <= chunk_rows:
        chunk = R                                  # single full-dim block (always legal)
    else:
        chunk = max(32, (chunk_rows // 32) * 32)   # multiple of 32: valid for any dtype tiling

    K = pl.cdiv(R, chunk)
    stream = K * chunk * LANES                     # elements the grid touches per (n, c)
    rem = None if stream == S else S - (K - 1) * chunk * LANES

    kernel = partial(_gdl_stats_kernel, apply_sigmoid=apply_sigmoid, rem=rem)
    stats = pl.pallas_call(
        kernel,
        out_shape=jax.ShapeDtypeStruct((C, N, 3, LANES), jnp.float32),
        grid=(C, N, K),
        in_specs=[
            pl.BlockSpec((1, 1, chunk, LANES), lambda c, n, k: (n, c, k, 0)),
            pl.BlockSpec((1, 1, chunk, LANES), lambda c, n, k: (n, c, k, 0)),
        ],
        out_specs=pl.BlockSpec((1, 1, 3, LANES), lambda c, n, k: (c, n, 0, 0)),
        scratch_shapes=[pltpu.VMEM((8, LANES), jnp.float32)] * 3,
        compiler_params=pltpu.CompilerParams(
            dimension_semantics=("parallel", "parallel", "arbitrary")),
    )(x, t)

    # (C, N, 3, 128) -> (C, 3): lane 0 of each row, summed over the batch axis.
    stats = stats[:, :, :, 0].sum(axis=1)
    target_sum = stats[:, 0]
    intersect_sum = stats[:, 1]
    input_sum = stats[:, 2]

    class_weights = 1.0 / jnp.maximum(target_sum * target_sum, epsilon)
    intersect = intersect_sum * class_weights
    if weight is not None:
        intersect = jnp.asarray(weight, jnp.float32) * intersect
    intersect = jnp.sum(intersect)
    denominator = jnp.sum((input_sum + target_sum) * class_weights)
    return 1.0 - 2.0 * intersect / jnp.maximum(denominator, epsilon)


def _reference(inputs, target, epsilon=1e-5):
    C = inputs.shape[1]
    p = jax.nn.sigmoid(inputs.astype(jnp.float32))
    p = jnp.moveaxis(p, 1, 0).reshape(C, -1)
    t = jnp.moveaxis(target, 1, 0).reshape(C, -1).astype(jnp.float32)
    target_sum = t.sum(-1)
    w = 1.0 / jnp.maximum(target_sum * target_sum, epsilon)
    intersect = jnp.sum((p * t).sum(-1) * w)
    denominator = jnp.sum((p + t).sum(-1) * w)
    return 1.0 - 2.0 * intersect / jnp.maximum(denominator, epsilon)


if __name__ == "__main__":
    key = jax.random.PRNGKey(0)
    k_in, k_t = jax.random.split(key)

    N, C, D, H, W = 2, 4, 16, 16, 16
    # Low-precision activations stream straight into the kernel; the f32
    # upcast happens in-kernel (per the performance review).
    logits = jax.random.normal(k_in, (N, C, D, H, W), dtype=jnp.float32).astype(jnp.bfloat16)
    target = (jax.random.uniform(k_t, (N, C, D, H, W)) > 0.7).astype(jnp.float32)

    loss = generalized_dice_loss(logits, target)
    loss = jax.block_until_ready(loss)

    ref = _reference(logits, target)
    assert loss.shape == () and bool(jnp.isfinite(loss))
    assert abs(float(loss) - float(ref)) < 1e-4, (float(loss), float(ref))
    print("KERNEL_OK")
</pallas_src>

<mosaic_0001>
module attributes {stable_mosaic.version = 11 : i64} {
  func.func @_gdl_stats_kernel(%arg0: i32, %arg1: i32, %arg2: i32, %arg3: memref<1x1x32x128xbf16, #tpu.memory_space<vmem>>, %arg4: memref<1x1x32x128xf32, #tpu.memory_space<vmem>>, %arg5: memref<1x1x3x128xf32, #tpu.memory_space<vmem>>, %arg6: memref<8x128xf32, #tpu.memory_space<vmem>>, %arg7: memref<8x128xf32, #tpu.memory_space<vmem>>, %arg8: memref<8x128xf32, #tpu.memory_space<vmem>>) attributes {dimension_semantics = [#tpu.dimension_semantics<parallel>, #tpu.dimension_semantics<parallel>, #tpu.dimension_semantics<arbitrary>], iteration_bounds = array<i64: 4, 2, 1>, scalar_prefetch = 0 : i64, scratch_operands = 3 : i64, tpu.core_type = #tpu.core_type<tc>, window_params = [{transform_indices = @transform_0, window_bounds = array<i64: 1, 1, 32, 128>}, {transform_indices = @transform_1, window_bounds = array<i64: 1, 1, 32, 128>}, {transform_indices = @transform_2, window_bounds = array<i64: 1, 1, 3, 128>}]} {
    %c0_i32 = arith.constant 0 : i32
    %0 = arith.cmpi eq, %arg2, %c0_i32 : i32
    %c0_i32_0 = arith.constant 0 : i32
    %1 = arith.cmpi eq, %arg2, %c0_i32_0 : i32
    %2 = arith.extui %1 : i1 to i32
    %c0_i32_1 = arith.constant 0 : i32
    %3 = arith.cmpi ne, %2, %c0_i32_1 : i32
    scf.if %3 {
      %cst_25 = arith.constant 0.000000e+00 : f32
      %32 = vector.broadcast %cst_25 : f32 to vector<8x128xf32>
      %c0_26 = arith.constant 0 : index
      %c0_27 = arith.constant 0 : index
      %33 = vector.load %arg6[%c0_26, %c0_27] : memref<8x128xf32, #tpu.memory_space<vmem>>, vector<8x128xf32>
      tpu.vector_store %arg6[%c0_26, %c0_27], %32 {strides = array<i32>} : memref<8x128xf32, #tpu.memory_space<vmem>>, vector<8x128xf32>,
      %cst_28 = arith.constant 0.000000e+00 : f32
      %34 = vector.broadcast %cst_28 : f32 to vector<8x128xf32>
      %c0_29 = arith.constant 0 : index
      %c0_30 = arith.constant 0 : index
      %35 = vector.load %arg7[%c0_29, %c0_30] : memref<8x128xf32, #tpu.memory_space<vmem>>, vector<8x128xf32>
      tpu.vector_store %arg7[%c0_29, %c0_30], %34 {strides = array<i32>} : memref<8x128xf32, #tpu.memory_space<vmem>>, vector<8x128xf32>,
      %cst_31 = arith.constant 0.000000e+00 : f32
      %36 = vector.broadcast %cst_31 : f32 to vector<8x128xf32>
      %c0_32 = arith.constant 0 : index
      %c0_33 = arith.constant 0 : index
      %37 = vector.load %arg8[%c0_32, %c0_33] : memref<8x128xf32, #tpu.memory_space<vmem>>, vector<8x128xf32>
      tpu.vector_store %arg8[%c0_32, %c0_33], %36 {strides = array<i32>} : memref<8x128xf32, #tpu.memory_space<vmem>>, vector<8x128xf32>,
    } else {
    }
    %c0 = arith.constant 0 : index
    %c0_2 = arith.constant 0 : index
    %c0_3 = arith.constant 0 : index
    %c0_4 = arith.constant 0 : index
    %4 = vector.load %arg3[%c0, %c0_2, %c0_3, %c0_4] : memref<1x1x32x128xbf16, #tpu.memory_space<vmem>>, vector<1x1x32x128xbf16>
    %5 = vector.shape_cast %4 : vector<1x1x32x128xbf16> to vector<32x128xbf16>
    %6 = arith.extf %5 : vector<32x128xbf16> to vector<32x128xf32>
    %c0_5 = arith.constant 0 : index
    %c0_6 = arith.constant 0 : index
    %c0_7 = arith.constant 0 : index
    %c0_8 = arith.constant 0 : index
    %7 = vector.load %arg4[%c0_5, %c0_6, %c0_7, %c0_8] : memref<1x1x32x128xf32, #tpu.memory_space<vmem>>, vector<1x1x32x128xf32>
    %8 = vector.shape_cast %7 : vector<1x1x32x128xf32> to vector<32x128xf32>
    %9 = arith.negf %6 : vector<32x128xf32>
    %10 = math.exp %9 : vector<32x128xf32>
    %cst = arith.constant 1.000000e+00 : f32
    %11 = vector.broadcast %cst : f32 to vector<32x128xf32>
    %12 = arith.addf %11, %10 : vector<32x128xf32>
    %13 = arith.divf %11, %12 : vector<32x128xf32>
    %c0_9 = arith.constant 0 : index
    %c0_10 = arith.constant 0 : index
    %14 = vector.load %arg6[%c0_9, %c0_10] : memref<8x128xf32, #tpu.memory_space<vmem>>, vector<8x128xf32>
    %15 = vector.shape_cast %8 : vector<32x128xf32> to vector<4x8x128xf32>
    %cst_11 = arith.constant dense<0.000000e+00> : vector<8x128xf32>
    %16 = vector.multi_reduction <add>, %15, %cst_11 [0] : vector<4x8x128xf32> to vector<8x128xf32>
    %17 = arith.addf %14, %16 : vector<8x128xf32>
    %c0_12 = arith.constant 0 : index
    %c0_13 = arith.constant 0 : index
    %18 = vector.load %arg6[%c0_12, %c0_13] : memref<8x128xf32, #tpu.memory_space<vmem>>, vector<8x128xf32>
    tpu.vector_store %arg6[%c0_12, %c0_13], %17 {strides = array<i32>} : memref<8x128xf32, #tpu.memory_space<vmem>>, vector<8x128xf32>,
    %c0_14 = arith.constant 0 : index
    %c0_15 = arith.constant 0 : index
    %19 = vector.load %arg7[%c0_14, %c0_15] : memref<8x128xf32, #tpu.memory_space<vmem>>, vector<8x128xf32>
    %20 = arith.mulf %13, %8 : vector<32x128xf32>
    %21 = vector.shape_cast %20 : vector<32x128xf32> to vector<4x8x128xf32>
    %cst_16 = arith.constant dense<0.000000e+00> : vector<8x128xf32>
    %22 = vector.multi_reduction <add>, %21, %cst_16 [0] : vector<4x8x128xf32> to vector<8x128xf32>
    %23 = arith.addf %19, %22 : vector<8x128xf32>
    %c0_17 = arith.constant 0 : index
    %c0_18 = arith.constant 0 : index
    %24 = vector.load %arg7[%c0_17, %c0_18] : memref<8x128xf32, #tpu.memory_space<vmem>>, vector<8x128xf32>
    tpu.vector_store %arg7[%c0_17, %c0_18], %23 {strides = array<i32>} : memref<8x128xf32, #tpu.memory_space<vmem>>, vector<8x128xf32>,
    %c0_19 = arith.constant 0 : index
    %c0_20 = arith.constant 0 : index
    %25 = vector.load %arg8[%c0_19, %c0_20] : memref<8x128xf32, #tpu.memory_space<vmem>>, vector<8x128xf32>
    %26 = vector.shape_cast %13 : vector<32x128xf32> to vector<4x8x128xf32>
    %cst_21 = arith.constant dense<0.000000e+00> : vector<8x128xf32>
    %27 = vector.multi_reduction <add>, %26, %cst_21 [0] : vector<4x8x128xf32> to vector<8x128xf32>
    %28 = arith.addf %25, %27 : vector<8x128xf32>
    %c0_22 = arith.constant 0 : index
    %c0_23 = arith.constant 0 : index
    %29 = vector.load %arg8[%c0_22, %c0_23] : memref<8x128xf32, #tpu.memory_space<vmem>>, vector<8x128xf32>
    tpu.vector_store %arg8[%c0_22, %c0_23], %28 {strides = array<i32>} : memref<8x128xf32, #tpu.memory_space<vmem>>, vector<8x128xf32>,
    %30 = arith.extui %0 : i1 to i32
    %c0_i32_24 = arith.constant 0 : i32
    %31 = arith.cmpi ne, %30, %c0_i32_24 : i32
    scf.if %31 {
      %c0_25 = arith.constant 0 : index
      %c0_26 = arith.constant 0 : index
      %32 = vector.load %arg6[%c0_25, %c0_26] : memref<8x128xf32, #tpu.memory_space<vmem>>, vector<8x128xf32>
      %33 = vector.shape_cast %32 : vector<8x128xf32> to vector<1x8x128xf32>
      %cst_27 = arith.constant dense<0.000000e+00> : vector<1xf32>
      %34 = vector.multi_reduction <add>, %33, %cst_27 [1, 2] : vector<1x8x128xf32> to vector<1xf32>
      %35 = vector.shape_cast %34 : vector<1xf32> to vector<1x1x1xf32>
      %36 = vector.extract %35[0, 0, 0] : f32 from vector<1x1x1xf32>
      %c0_28 = arith.constant 0 : index
      %c0_29 = arith.constant 0 : index
      %37 = vector.load %arg7[%c0_28, %c0_29] : memref<8x128xf32, #tpu.memory_space<vmem>>, vector<8x128xf32>
      %38 = vector.shape_cast %37 : vector<8x128xf32> to vector<1x8x128xf32>
      %cst_30 = arith.constant dense<0.000000e+00> : vector<1xf32>
      %39 = vector.multi_reduction <add>, %38, %cst_30 [1, 2] : vector<1x8x128xf32> to vector<1xf32>
      %40 = vector.shape_cast %39 : vector<1xf32> to vector<1x1x1xf32>
      %41 = vector.extract %40[0, 0, 0] : f32 from vector<1x1x1xf32>
      %c0_31 = arith.constant 0 : index
      %c0_32 = arith.constant 0 : index
      %42 = vector.load %arg8[%c0_31, %c0_32] : memref<8x128xf32, #tpu.memory_space<vmem>>, vector<8x128xf32>
      %43 = vector.shape_cast %42 : vector<8x128xf32> to vector<1x8x128xf32>
      %cst_33 = arith.constant dense<0.000000e+00> : vector<1xf32>
      %44 = vector.multi_reduction <add>, %43, %cst_33 [1, 2] : vector<1x8x128xf32> to vector<1xf32>
      %45 = vector.shape_cast %44 : vector<1xf32> to vector<1x1x1xf32>
      %46 = vector.extract %45[0, 0, 0] : f32 from vector<1x1x1xf32>
      %47 = vector.broadcast %36 : f32 to vector<1x128xf32>
      %48 = vector.broadcast %41 : f32 to vector<1x128xf32>
      %49 = vector.broadcast %46 : f32 to vector<1x128xf32>
      %50 = tpu.concatenate %47, %48, %49 in 0 : vector<1x128xf32>, vector<1x128xf32>, vector<1x128xf32> -> vector<3x128xf32>
      %51 = vector.shape_cast %50 : vector<3x128xf32> to vector<1x1x3x128xf32>
      %c0_34 = arith.constant 0 : index
      %c0_35 = arith.constant 0 : index
      %c0_36 = arith.constant 0 : index
      %c0_37 = arith.constant 0 : index
      %52 = vector.load %arg5[%c0_34, %c0_35, %c0_36, %c0_37] : memref<1x1x3x128xf32, #tpu.memory_space<vmem>>, vector<1x1x3x128xf32>
      tpu.vector_store %arg5[%c0_34, %c0_35, %c0_36, %c0_37], %51 {strides = array<i32>} : memref<1x1x3x128xf32, #tpu.memory_space<vmem>>, vector<1x1x3x128xf32>,
    } else {
    }
    return
  }
  func.func @transform_0(%arg0: i32, %arg1: i32, %arg2: i32) -> (i32, i32, i32, i32) {
    %c0_i32 = arith.constant 0 : i32
    %c0_i32_0 = arith.constant 0 : i32
    return %arg1, %arg0, %arg2, %c0_i32 : i32, i32, i32, i32
  }
  func.func @transform_1(%arg0: i32, %arg1: i32, %arg2: i32) -> (i32, i32, i32, i32) {
    %c0_i32 = arith.constant 0 : i32
    %c0_i32_0 = arith.constant 0 : i32
    return %arg1, %arg0, %arg2, %c0_i32 : i32, i32, i32, i32
  }
  func.func @transform_2(%arg0: i32, %arg1: i32, %arg2: i32) -> (i32, i32, i32, i32) {
    %c0_i32 = arith.constant 0 : i32
    %c0_i32_0 = arith.constant 0 : i32
    %c0_i32_1 = arith.constant 0 : i32
    return %arg0, %arg1, %c0_i32, %c0_i32_0 : i32, i32, i32, i32
  }
}

</mosaic_0001>

<llo_original>
// kernel: tpu_custom_call.1
$region0: #{tpu_custom_call.1}
  #allocation0 [shape = 'u32[]', space=smem, size = 0x4, offset = 0x4, fixed_abs, tag = 'smem constant byte address 0x4 - core index']
  #allocation1 [shape = 'u32[144,128]{1,0:T(1,128)}', space=vmem, size = 0x12000, scoped, tag = 'internal scratch']
  #allocation2 [shape = 'f32[8,128]{1,0:T(8,128)}', space=vmem, size = 0x1000, scoped, tag = 'scratch operand']
  #allocation3 [shape = 'f32[8,128]{1,0:T(8,128)}', space=vmem, size = 0x1000, scoped, tag = 'scratch operand']
  #allocation4 [shape = 'f32[8,128]{1,0:T(8,128)}', space=vmem, size = 0x1000, scoped, tag = 'scratch operand']
  %s0 = inlined_call_operand.hbm [shape: bf16[2,4,32,128], index: 0, kind: input, shape index: {}]
  %s1 = inlined_call_operand.hbm [shape: f32[2,4,32,128], index: 1, kind: input, shape index: {}]
  %s2 = inlined_call_operand.vmem [shape: f32[4,2,3,128], index: 2, kind: output, shape index: {}]
  %s3 = sld [smem:[#allocation0]]
  $region57: #{tpu_custom_call.1} parent=0
    _
  %s5 = ssub.s32 1, %s3
  %s6 = scalar_select 0, %s5, %s3
  $region1: #{tpu_custom_call.1} parent=0
    #allocation5 [shape = 'u8[16384]{0}', space=vmem, size = 0x4000, scoped, tag = 'input window, operand 0']
    #allocation6 [shape = 's32[2]{0}', space=sflag, size = 0x8, scoped, tag = 'scoped memory for tpu_custom_call.1']
    #allocation7 [shape = 'u8[32768]{0}', space=vmem, size = 0x8000, scoped, tag = 'input window, operand 1']
    #allocation8 [shape = 's32[2]{0}', space=sflag, size = 0x8, scoped, tag = 'scoped memory for tpu_custom_call.1']
    %7 = vsyncpa [#allocation6], 0
    %s8 = scalar_lea.sflag [#allocation6], 1
    %9 = vsyncpa %s8, 0
    %10 = vsyncpa [#allocation8], 0
    %s11 = scalar_lea.sflag [#allocation8], 1
    %12 = vsyncpa %s11, 0
    loop: start=0, step=1, limit=10
    $region2: #{tpu_custom_call.1} parent=1 // loop_pre_header
      _
    $region3: #{tpu_custom_call.1} parent=1 // loop_header
      %s14 = sphi 0, %s18
      %p15 = scmp.ge.s32.totalorder %s14, 10
      %s21 = sphi 0, %s40
      %s22 = sphi 0, %s36
      %s23 = sphi 0, %s32
      %s24 = sphi 0, %s21
      %s25 = sphi 0, %s22
      %s26 = sphi 0, %s23
      %s27 = sphi 0, %s24
      %s28 = sphi 0, %s25
      %s29 = sphi 0, %s26
      %s47 = sphi 0, %s49
      %s50 = sphi 0, %s47
      %s51 = sphi 0, %s50
      %s67 = sphi 0, %s51
      %s77 = sphi 0, %s79
      %s80 = sphi 0, %s77
      %s81 = sphi 0, %s80
      %s97 = sphi 0, %s81
      %s105 = sphi 0, %s107
      %s108 = sphi 0, %s105
      %s109 = sphi 0, %s108
      %s125 = sphi 0, %s109
    $region4: #{tpu_custom_call.1} parent=1 // loop_header_branch
      %17 = sbr.rel (%p15) target = $region8
    $region5: #{tpu_custom_call.1} parent=1 // loop_body
      %s19 = ssub.s32 %s14, 1
      %s20 = ssub.s32 %s14, 2
      %s30 = sadd.s32 1, %s23
      %p31 = scmp.ge.s32.totalorder %s30, 1
      %s32 = scalar_select %p31, 0, %s30
      %s33 = sadd.s32 1, %s22
      %s34 = scalar_select %p31, %s33, %s22
      %p35 = scmp.ge.s32.totalorder %s34, 2
      %s36 = scalar_select %p35, 0, %s34
      %s37 = sadd.s32 1, %s21
      %s38 = scalar_select %p35, %s37, %s21
      %p39 = scmp.ge.s32.totalorder %s38, 4
      %s40 = scalar_select %p39, 0, %s38
      %s41 = ssub.s32 %s22, %s36
      %s42 = ssub.s32 %s21, %s40
      %s43 = sor.u32 %s41, %s42
      %s44 = ssub.s32 %s23, %s32
      %s45 = sor.u32 %s43, %s44
      %p46 = scmp.eq.s32.totalorder %s45, 0
      %s48 = sadd.s32 %s47, 1
      %s49 = scalar_select %p46, %s47, %s48
      %p52 = pneg %p46
      %p53 = scmp.eq.s32.totalorder %s14, 7
      %p54 = por %p52, %p53
      %p55 = scmp.ne.s32.totalorder %s47, %s50
      %p56 = scmp.eq.s32.totalorder %s14, 0
      %p57 = por %p55, %p56
      %p58 = scmp.ne.s32.totalorder %s47, %s50
      %p59 = scmp.eq.s32.totalorder %s19, 7
      %p60 = por %p58, %p59
      %p61 = scmp.ne.s32.totalorder %s50, %s51
      %p62 = scmp.eq.s32.totalorder %s19, 0
      %p63 = por %p61, %p62
      %p64 = scmp.ne.s32.totalorder %s50, %s51
      %p65 = scmp.eq.s32.totalorder %s20, 7
      %p66 = por %p64, %p65
      %p68 = scmp.ne.s32.totalorder %s51, %s67
      %p69 = scmp.eq.s32.totalorder %s20, 0
      %p70 = por %p68, %p69
      %s71 = ssub.s32 %s22, %s36
      %s72 = ssub.s32 %s21, %s40
      %s73 = sor.u32 %s71, %s72
      %s74 = ssub.s32 %s23, %s32
      %s75 = sor.u32 %s73, %s74
      %p76 = scmp.eq.s32.totalorder %s75, 0
      %s78 = sadd.s32 %s77, 1
      %s79 = scalar_select %p76, %s77, %s78
      %p82 = pneg %p76
      %p83 = scmp.eq.s32.totalorder %s14, 7
      %p84 = por %p82, %p83
      %p85 = scmp.ne.s32.totalorder %s77, %s80
      %p86 = scmp.eq.s32.totalorder %s14, 0
      %p87 = por %p85, %p86
      %p88 = scmp.ne.s32.totalorder %s77, %s80
      %p89 = scmp.eq.s32.totalorder %s19, 7
      %p90 = por %p88, %p89
      %p91 = scmp.ne.s32.totalorder %s80, %s81
      %p92 = scmp.eq.s32.totalorder %s19, 0
      %p93 = por %p91, %p92
      %p94 = scmp.ne.s32.totalorder %s80, %s81
      %p95 = scmp.eq.s32.totalorder %s20, 7
      %p96 = por %p94, %p95
      %p98 = scmp.ne.s32.totalorder %s81, %s97
      %p99 = scmp.eq.s32.totalorder %s20, 0
      %p100 = por %p98, %p99
      %s101 = ssub.s32 %s21, %s40
      %s102 = ssub.s32 %s22, %s36
      %s103 = sor.u32 %s101, %s102
      %p104 = scmp.eq.s32.totalorder %s103, 0
      %s106 = sadd.s32 %s105, 1
      %s107 = scalar_select %p104, %s105, %s106
      %p110 = pneg %p104
      %p111 = scmp.eq.s32.totalorder %s14, 7
      %p112 = por %p110, %p111
      %p113 = scmp.ne.s32.totalorder %s105, %s108
      %p114 = scmp.eq.s32.totalorder %s14, 0
      %p115 = por %p113, %p114
      %p116 = scmp.ne.s32.totalorder %s105, %s108
      %p117 = scmp.eq.s32.totalorder %s19, 7
      %p118 = por %p116, %p117
      %p119 = scmp.ne.s32.totalorder %s108, %s109
      %p120 = scmp.eq.s32.totalorder %s19, 0
      %p121 = por %p119, %p120
      %p122 = scmp.ne.s32.totalorder %s108, %s109
      %p123 = scmp.eq.s32.totalorder %s20, 7
      %p124 = por %p122, %p123
      %p126 = scmp.ne.s32.totalorder %s109, %s125
      %p127 = scmp.eq.s32.totalorder %s20, 0
      %p128 = por %p126, %p127
      %p129 = scmp.le.s32.totalorder 1, %s14
      %p130 = scmp.lt.s32.totalorder %s14, 9
      %p131 = pnand %p129, %p130
      %p132 = pneg %p131
      // Predicated region
      $region9: #{tpu_custom_call.1} parent=5 // pred_check
        _
      $region10: #{tpu_custom_call.1} parent=5 // pred_check_branch
        %134 = sbr.rel (%p131) target = $region12
      $region11: #{tpu_custom_call.1} parent=5 // pred_region
        %s135 = ssub.s32 %s14, 1
      $region12: #{tpu_custom_call.1} parent=5 // pred_fallthru
        _
      %p136 = scmp.lt.s32.totalorder %s14, 8
      // Predicated region
      $region13: #{tpu_custom_call.1} parent=5 // pred_check
        %p137 = pneg %p136
      $region14: #{tpu_custom_call.1} parent=5 // pred_check_branch
        %139 = sbr.rel (%p137) target = $region16
      $region15: #{tpu_custom_call.1} parent=5 // pred_region
        // Predicated region
        $region17: #{tpu_custom_call.1} parent=15 // pred_check
          %p140 = pneg %p57
        $region18: #{tpu_custom_call.1} parent=15 // pred_check_branch
          %142 = sbr.rel (%p140) target = $region20
        $region19: #{tpu_custom_call.1} parent=15 // pred_region
          %s143 = sand.u32 %s47, 1
          %s144 = scalar_lea.sflag [#allocation6], %s143
          %s145 = sand.u32 %s47, 1
          %s146 = smul.addr %s145, 16
          %s147 = scalar_lea.vmem [#allocation5], %s146
          %s148 = smul.u32 4, %s23
          %s150 = ssub.s32 256, 256
          %151 = vsyncadd %s144, %s150
          %s152 = smul.addr %s21, 4
          %s153 = sadd.s32 %s148, %s152
          %s154 = smul.addr %s22, 16
          %s155 = sadd.s32 %s153, %s154
          %s156 = smul.addr %s155, 64
          %s157 = scalar_lea.hbm %s0, %s156
          %s158 = sshll.u32 %s147, 4
          %s159 = int_to_ptr.vmem [resolvable:$true] %s158
          %164 = dma.hbm_to_vmem [thread:$0]  %s157, 256, %s159, %s144, 64, 64, 4
        $region20: #{tpu_custom_call.1} parent=15 // pred_fallthru
          _
        // Predicated region
        $region21: #{tpu_custom_call.1} parent=15 // pred_check
          %p165 = pneg %p87
        $region22: #{tpu_custom_call.1} parent=15 // pred_check_branch
          %167 = sbr.rel (%p165) target = $region24
        $region23: #{tpu_custom_call.1} parent=15 // pred_region
          %s168 = sand.u32 %s77, 1
          %s169 = scalar_lea.sflag [#allocation8], %s168
          %s170 = sand.u32 %s77, 1
          %s171 = smul.addr %s170, 32
          %s172 = scalar_lea.vmem [#allocation7], %s171
          %s173 = smul.u32 4, %s23
          %s175 = ssub.s32 512, 512
          %176 = vsyncadd %s169, %s175
          %s177 = smul.addr %s21, 4
          %s178 = sadd.s32 %s173, %s177
          %s179 = smul.addr %s22, 16
          %s180 = sadd.s32 %s178, %s179
          %s181 = smul.addr %s180, 128
          %s182 = scalar_lea.hbm %s1, %s181
          %s183 = sshll.u32 %s172, 4
          %s184 = int_to_ptr.vmem [resolvable:$true] %s183
          %189 = dma.hbm_to_vmem [thread:$0]  %s182, 512, %s184, %s169, 128, 128, 8
        $region24: #{tpu_custom_call.1} parent=15 // pred_fallthru
          _
      $region16: #{tpu_custom_call.1} parent=5 // pred_fallthru
        _
      %p190 = scmp.le.s32.totalorder 1, %s14
      %p191 = scmp.lt.s32.totalorder %s14, 9
      %p192 = pnand %p190, %p191
      %p193 = pneg %p192
      // Predicated region
      $region25: #{tpu_custom_call.1} parent=5 // pred_check
        _
      $region26: #{tpu_custom_call.1} parent=5 // pred_check_branch
        %195 = sbr.rel (%p192) target = $region28
      $region27: #{tpu_custom_call.1} parent=5 // pred_region
        %s196 = ssub.s32 %s14, 1
        %s197 = sand.u32 %s50, 1
        %s198 = scalar_lea.sflag [#allocation6], %s197
        %s199 = sand.u32 %s50, 1
        %s200 = smul.addr %s199, 16
        %s201 = scalar_lea.vmem [#allocation5], %s200
        // Predicated region
        $region29: #{tpu_custom_call.1} parent=27 // pred_check
          %p202 = pneg %p63
        $region30: #{tpu_custom_call.1} parent=27 // pred_check_branch
          %204 = sbr.rel (%p202) target = $region32
        $region31: #{tpu_custom_call.1} parent=27 // pred_region
          %205 = dma.done %s198, 256
        $region32: #{tpu_custom_call.1} parent=27 // pred_fallthru
          _
        %s206 = sand.u32 %s80, 1
        %s207 = scalar_lea.sflag [#allocation8], %s206
        %s208 = sand.u32 %s80, 1
        %s209 = smul.addr %s208, 32
        %s210 = scalar_lea.vmem [#allocation7], %s209
        // Predicated region
        $region33: #{tpu_custom_call.1} parent=27 // pred_check
          %p211 = pneg %p93
        $region34: #{tpu_custom_call.1} parent=27 // pred_check_branch
          %213 = sbr.rel (%p211) target = $region36
        $region35: #{tpu_custom_call.1} parent=27 // pred_region
          %214 = dma.done %s207, 512
        $region36: #{tpu_custom_call.1} parent=27 // pred_fallthru
          _
        %s215 = sand.u32 %s50, 1
        %s216 = scalar_lea.sflag [#allocation6], %s215
        %s217 = sand.u32 %s50, 1
        %s218 = smul.addr %s217, 16
        %s219 = scalar_lea.vmem [#allocation5], %s218
        %p220 = pneg %p63
        %p221 = pneg %p60
        %s222 = sand.u32 %s80, 1
        %s223 = scalar_lea.sflag [#allocation8], %s222
        %s224 = sand.u32 %s80, 1
        %s225 = smul.addr %s224, 32
        %s226 = scalar_lea.vmem [#allocation7], %s225
        %p227 = pneg %p93
        %p228 = pneg %p90
        %p229 = pneg %p121
        %p230 = pneg %p118
        %p231 = scmp.lt.s32.totalorder %s24, 3
        %s232 = scalar_select %p231, %s24, 3
        %p233 = scmp.lt.s32.totalorder %s25, 1
        %s234 = scalar_select %p233, %s25, 1
        %s235 = smul.addr %s232, 2
        %s236 = sadd.s32 %s234, %s235
        %s237 = smul.addr %s236, 4
        %s238 = scalar_lea.vmem %s2, %s237
        %s239 = smul.u32 4, %s26
        %s240 = smul.u32 4, %s26
        %p241 = scmp.lt.s32.totalorder %s24, 3
        %s242 = scalar_select %p241, %s24, 3
        %p243 = scmp.lt.s32.totalorder %s25, 1
        %s244 = scalar_select %p243, %s25, 1
        %s245 = smul.addr %s242, 2
        %s246 = sadd.s32 %s244, %s245
        %s247 = smul.addr %s246, 4
        %s248 = scalar_lea.vmem %s2, %s247
        %p249 = scmp.eq.s32.totalorder %s26, 0
        // Predicated region
        $region37: #{tpu_custom_call.1} parent=27 // pred_check
          %p250 = pneg %p249
        $region38: #{tpu_custom_call.1} parent=27 // pred_check_branch
          %252 = sbr.rel (%p250) target = $region40
        $region39: #{tpu_custom_call.1} parent=27 // pred_region
          %253 = vst [vmem:[#allocation2] sm:$0xff] 0.0
          %254 = vst [vmem:[#allocation3] sm:$0xff] 0.0
          %255 = vst [vmem:[#allocation4] sm:$0xff] 0.0
        $region40: #{tpu_custom_call.1} parent=27 // pred_fallthru
          _
        %v256 = vld [vmem:[%s201] sm:$0xf]
        %v257 = vld [vmem:[%s201 + $0x4] sm:$0xf]
        %v258 = vld [vmem:[%s201 + $0x8] sm:$0xf]
        %v259 = vld [vmem:[%s201 + $0xc] sm:$0xf]
        %v260 = vunpack.c.l.bf16 %v256
        %v261 = vunpack.c.l.bf16 %v257
        %v262 = vunpack.c.l.bf16 %v258
        %v263 = vunpack.c.l.bf16 %v259
        %v264 = vld [vmem:[%s210] sm:$0xff]
        %v265 = vld [vmem:[%s210 + $0x8] sm:$0xff]
        %v266 = vld [vmem:[%s210 + $0x10] sm:$0xff]
        %v267 = vld [vmem:[%s210 + $0x18] sm:$0xff]
        %v268 = vxor.u32 %v260, 2147483648
        %v269 = vxor.u32 %v261, 2147483648
        %v270 = vxor.u32 %v262, 2147483648
        %v271 = vxor.u32 %v263, 2147483648
        %v272 = vmul.f32 %v268, 1.442695
        %v273 = vpow.pop %v272
        %v274 = vmul.f32 %v269, 1.442695
        %v275 = vpow.pop %v274
        %v276 = vmul.f32 %v270, 1.442695
        %v277 = vpow.pop %v276
        %v278 = vmul.f32 %v271, 1.442695
        %v279 = vpow.pop %v278
        %v280 = vadd.f32 %v273, 1.0
        %v281 = vadd.f32 %v275, 1.0
        %v282 = vadd.f32 %v277, 1.0
        %v283 = vadd.f32 %v279, 1.0
        %v284 = vrcp.pop %v280
        %v285 = vmul.f32 1.0, %v284
        %v286 = vrcp.pop %v281
        %v287 = vmul.f32 1.0, %v286
        %v288 = vrcp.pop %v282
        %v289 = vmul.f32 1.0, %v288
        %v290 = vrcp.pop %v283
        %v291 = vmul.f32 1.0, %v290
        %v292 = vld [vmem:[#allocation2] sm:$0xff]
        %v293 = vadd.f32 %v264, %v265
        %v294 = vadd.f32 %v293, %v266
        %v295 = vadd.f32 %v294, %v267
        %v296 = vadd.f32 %v292, %v295
        %297 = vst [vmem:[#allocation2] sm:$0xff] %v296
        %v298 = vld [vmem:[#allocation3] sm:$0xff]
        %v299 = vmul.f32 %v285, %v264
        %v300 = vmul.f32 %v287, %v265
        %v301 = vmul.f32 %v289, %v266
        %v302 = vmul.f32 %v291, %v267
        %v303 = vadd.f32 %v299, %v300
        %v304 = vadd.f32 %v303, %v301
        %v305 = vadd.f32 %v304, %v302
        %v306 = vadd.f32 %v298, %v305
        %307 = vst [vmem:[#allocation3] sm:$0xff] %v306
        %v308 = vld [vmem:[#allocation4] sm:$0xff]
        %v309 = vadd.f32 %v285, %v287
        %v310 = vadd.f32 %v309, %v289
        %v311 = vadd.f32 %v310, %v291
        %v312 = vadd.f32 %v308, %v311
        %313 = vst [vmem:[#allocation4] sm:$0xff] %v312
        // Predicated region
        $region41: #{tpu_custom_call.1} parent=27 // pred_check
          %p314 = pneg %p249
        $region42: #{tpu_custom_call.1} parent=27 // pred_check_branch
          %316 = sbr.rel (%p314) target = $region44
        $region43: #{tpu_custom_call.1} parent=27 // pred_region
          %v317 = vld [vmem:[#allocation2] sm:$0xff]
          %318 = vadd.xlane.f32.xlu0 %v317
          %v319 = vpop.xlane.xlu0 %318
          %v320 = vrot.slane %v319, 4
          %v321 = vadd.f32 %v319, %v320
          %v322 = vrot.slane %v321, 2
          %v323 = vadd.f32 %v321, %v322
          %v324 = vrot.slane %v323, 1
          %v325 = vadd.f32 %v323, %v324
          %s326 = vtos %v325
          %v327 = vld [vmem:[#allocation3] sm:$0xff]
          %328 = vadd.xlane.f32.xlu0 %v327
          %v329 = vpop.xlane.xlu0 %328
          %v330 = vrot.slane %v329, 4
          %v331 = vadd.f32 %v329, %v330
          %v332 = vrot.slane %v331, 2
          %v333 = vadd.f32 %v331, %v332
          %v334 = vrot.slane %v333, 1
          %v335 = vadd.f32 %v333, %v334
          %s336 = vtos %v335
          %v337 = vld [vmem:[#allocation4] sm:$0xff]
          %338 = vadd.xlane.f32.xlu0 %v337
          %v339 = vpop.xlane.xlu0 %338
          %v340 = vrot.slane %v339, 4
          %v341 = vadd.f32 %v339, %v340
          %v342 = vrot.slane %v341, 2
          %v343 = vadd.f32 %v341, %v342
          %v344 = vrot.slane %v343, 1
          %v345 = vadd.f32 %v343, %v344
          %s346 = vtos %v345
          %v347 = vstv %s326
          %v348 = vstv %s336
          %v349 = vstv %s346
          %vm350 = vcmask 1040384
          %v351 = vsel %vm350, %v347, %v348
          %vm352 = vcmask 1041408
          %v353 = vsel %vm352, %v351, %v349
          %354 = vst [vmem:[%s248] sm:$0x7] %v353
        $region44: #{tpu_custom_call.1} parent=27 // pred_fallthru
          _
        %p355 = scmp.lt.s32.totalorder %s24, 3
        %s356 = scalar_select %p355, %s24, 3
        %p357 = scmp.lt.s32.totalorder %s25, 1
        %s358 = scalar_select %p357, %s25, 1
        %s359 = smul.addr %s356, 2
        %s360 = sadd.s32 %s358, %s359
        %s361 = smul.addr %s360, 4
        %s362 = scalar_lea.vmem %s2, %s361
        // Predicated region
        $region45: #{tpu_custom_call.1} parent=27 // pred_check
          %p363 = pneg %p118
        $region46: #{tpu_custom_call.1} parent=27 // pred_check_branch
          %365 = sbr.rel (%p363) target = $region48
        $region47: #{tpu_custom_call.1} parent=27 // pred_region
          _
        $region48: #{tpu_custom_call.1} parent=27 // pred_fallthru
          _
      $region28: #{tpu_custom_call.1} parent=5 // pred_fallthru
        _
      %p366 = scmp.le.s32.totalorder 2, %s14
      // Predicated region
      $region49: #{tpu_custom_call.1} parent=5 // pred_check
        %p367 = pneg %p366
      $region50: #{tpu_custom_call.1} parent=5 // pred_check_branch
        %369 = sbr.rel (%p367) target = $region52
      $region51: #{tpu_custom_call.1} parent=5 // pred_region
        %s370 = ssub.s32 %s14, 2
        // Predicated region
        $region53: #{tpu_custom_call.1} parent=51 // pred_check
          %p371 = pneg %p124
        $region54: #{tpu_custom_call.1} parent=51 // pred_check_branch
          %373 = sbr.rel (%p371) target = $region56
        $region55: #{tpu_custom_call.1} parent=51 // pred_region
          %p374 = scmp.lt.s32.totalorder %s27, 3
          %s375 = scalar_select %p374, %s27, 3
          %p376 = scmp.lt.s32.totalorder %s28, 1
          %s377 = scalar_select %p376, %s28, 1
          %s378 = smul.addr %s375, 2
          %s379 = sadd.s32 %s377, %s378
          %s380 = smul.addr %s379, 4
          %s381 = scalar_lea.vmem %s2, %s380
        $region56: #{tpu_custom_call.1} parent=51 // pred_fallthru
          _
      $region52: #{tpu_custom_call.1} parent=5 // pred_fallthru
        _
    $region6: #{tpu_custom_call.1} parent=1 // loop_footer
      %s18 = sadd.s32 1, %s14
    $region7: #{tpu_custom_call.1} parent=1 // loop_footer_branch
      %13 = sbr.rel target = $region3
    $region8: #{tpu_custom_call.1} parent=1 // loop_exit
      _
    %382 = vsyncpa [#allocation6], 1
    %s383 = scalar_lea.sflag [#allocation6], 1
    %384 = vsyncpa %s383, 1
    %385 = vsyncpa [#allocation8], 1
    %s386 = scalar_lea.sflag [#allocation8], 1
    %387 = vsyncpa %s386, 1

</llo_original>
